<compile_context>
chip_gen: v7x
topology: tpu7x:2x2x1
jax: 0.10.0
libtpu: 0.0.40
codegen_flags: <defaults>
</compile_context>

<pallas_src>
import functools

import jax
import jax.numpy as jnp
from jax.experimental import pallas as pl
from jax.experimental.pallas import tpu as pltpu

LANES = 128  # lane-dense output width (one vreg lane row)


def _round_up(n, m):
    return (n + m - 1) // m * m


def _fuse_weights(params):
    """Host-side (plain JAX) one-time weight fusion / layout plumbing."""
    w_va = jnp.concatenate([params["wv"], params["wa"]], axis=1)      # [64, 512]
    b_va = jnp.concatenate([params["bv"], params["ba"]], axis=1)      # [1, 512]
    w_head = jnp.zeros((512, LANES), jnp.float32)
    w_head = w_head.at[0:256, 0:1].set(params["wvo"])                 # value head -> lane 0
    w_head = w_head.at[256:512, 1:5].set(params["wao"])               # adv head   -> lanes 1:5
    b_head = jnp.zeros((1, LANES), jnp.float32)
    b_head = b_head.at[:, 0:1].set(params["bvo"])
    b_head = b_head.at[:, 1:5].set(params["bao"])
    return w_va, b_va, w_head, b_head


# ---------------------------------------------------------------------------
# Primary path: whole batch in one grid step, fully fused forward + batch mean.
#   q[:, 1:5] = value + adv - mean_batch(adv)   (lanes 1:5 are what we keep)
# ---------------------------------------------------------------------------
def qnet_fused_kernel(x_ref, w1_ref, b1_ref, wva_ref, bva_ref, wh_ref, bh_ref,
                      q_ref, *, batch, rows):
    x = x_ref[...]                                                     # [rows, 8]

    # fc1 + relu  (K=8 -> N=64; do NOT pad 64 to 128, extra MXU passes for nothing)
    h = jnp.dot(x, w1_ref[...], preferred_element_type=jnp.float32)
    h = jnp.maximum(h + b1_ref[...], 0.0)                             # [rows, 64]

    # fused value/advantage hidden layer: one [64, 512] matmul + relu
    va = jnp.dot(h, wva_ref[...], preferred_element_type=jnp.float32)
    va = jnp.maximum(va + bva_ref[...], 0.0)                          # [rows, 512]

    # fused heads: one lane-dense [512, 128] matmul
    head = jnp.dot(va, wh_ref[...], preferred_element_type=jnp.float32)
    head = head + bh_ref[...]                                         # [rows, 128]

    # batch column-sum over *valid* rows only (static branch: mask only if padded)
    if rows == batch:
        col_sum = jnp.sum(head, axis=0, keepdims=True)                # [1, 128]
    else:
        row = jax.lax.broadcasted_iota(jnp.int32, (rows, 1), 0)
        valid = (row < batch).astype(jnp.float32)
        col_sum = jnp.sum(head * valid, axis=0, keepdims=True)
    mean = col_sum * (1.0 / batch)

    # lanes 1:5 hold Q = value + adv - adv_avg; other lanes are harmless filler
    q_ref[...] = head[:, 0:1] + head - mean                           # lane-dense store


# ---------------------------------------------------------------------------
# Large-batch fallback: batch-tiled head-only kernel, "parallel" grid axis
# (megacore shardable on v7x).  The [B,4] mean epilogue is plain JAX.
# ---------------------------------------------------------------------------
def qnet_head_kernel(x_ref, w1_ref, b1_ref, wva_ref, bva_ref, wh_ref, bh_ref,
                     head_ref):
    x = x_ref[...]
    h = jnp.dot(x, w1_ref[...], preferred_element_type=jnp.float32)
    h = jnp.maximum(h + b1_ref[...], 0.0)
    va = jnp.dot(h, wva_ref[...], preferred_element_type=jnp.float32)
    va = jnp.maximum(va + bva_ref[...], 0.0)
    head = jnp.dot(va, wh_ref[...], preferred_element_type=jnp.float32)
    head_ref[...] = head + bh_ref[...]


def qnet_forward(x, params, *, max_fused_rows=2048, tile=512):
    """x: [B, 8] float32; params: dict (see init_params). Returns Q: [B, 4].

    max_fused_rows: largest padded batch handled by the single-grid-step fused
    kernel (budgeted conservatively for v7x's 64 MiB VMEM / 32 MiB scoped
    default: ~0.4 MiB weights + ~2.6 KiB/row of activations + output).
    """
    B, F = x.shape
    w_va, b_va, w_head, b_head = _fuse_weights(params)

    resident = lambda i: (0, 0)  # weights stay resident in VMEM across the grid
    weight_specs = [
        pl.BlockSpec((F, 64), resident),          # W1
        pl.BlockSpec((1, 64), resident),          # b1
        pl.BlockSpec((64, 512), resident),        # [Wv | Wa]
        pl.BlockSpec((1, 512), resident),         # [bv | ba]
        pl.BlockSpec((512, LANES), resident),     # fused head weight
        pl.BlockSpec((1, LANES), resident),       # fused head bias
    ]
    weight_args = (params["w1"], params["b1"], w_va, b_va, w_head, b_head)

    B_pad8 = _round_up(B, 8)
    if B_pad8 <= max_fused_rows:
        # ---- single launch, single grid step, everything fused ----
        B_pad = B_pad8
        x_pad = x if B_pad == B else jnp.zeros((B_pad, F), x.dtype).at[:B].set(x)
        q_full = pl.pallas_call(
            functools.partial(qnet_fused_kernel, batch=B, rows=B_pad),
            grid=(1,),
            in_specs=[pl.BlockSpec((B_pad, F), resident)] + weight_specs,
            out_specs=pl.BlockSpec((B_pad, LANES), resident),
            out_shape=jax.ShapeDtypeStruct((B_pad, LANES), jnp.float32),
            compiler_params=pltpu.CompilerParams(
                dimension_semantics=("arbitrary",)),
        )(x_pad, *weight_args)
        return q_full[:B, 1:5]

    # ---- large-batch fallback: batch-tiled, independent tiles ----
    assert tile % 8 == 0, "tile must be a sublane multiple"
    TB = tile
    B_pad = _round_up(B, TB)
    n_tiles = B_pad // TB
    x_pad = jnp.zeros((B_pad, F), x.dtype).at[:B].set(x)

    head = pl.pallas_call(
        qnet_head_kernel,
        grid=(n_tiles,),
        in_specs=[pl.BlockSpec((TB, F), lambda i: (i, 0))] + weight_specs,
        out_specs=pl.BlockSpec((TB, LANES), lambda i: (i, 0)),
        out_shape=jax.ShapeDtypeStruct((B_pad, LANES), jnp.float32),
        compiler_params=pltpu.CompilerParams(
            dimension_semantics=("parallel",)),   # megacore-shardable on v7x
    )(x_pad, *weight_args)

    # tiny epilogue on [B, 4] in plain JAX (no second Pallas launch needed)
    value = head[:B, 0:1]
    adv = head[:B, 1:5]
    return value + adv - jnp.mean(adv, axis=0, keepdims=True)


def init_params(key):
    """Deterministic init mimicking nn.Linear default uniform(-1/sqrt(fan_in), +)."""
    def linear(key, fan_in, fan_out):
        kw, kb = jax.random.split(key)
        bound = 1.0 / jnp.sqrt(jnp.float32(fan_in))
        w = jax.random.uniform(kw, (fan_in, fan_out), jnp.float32, -bound, bound)
        b = jax.random.uniform(kb, (1, fan_out), jnp.float32, -bound, bound)
        return w, b

    k1, k2, k3, k4, k5 = jax.random.split(key, 5)
    w1, b1 = linear(k1, 8, 64)
    wv, bv = linear(k2, 64, 256)
    wa, ba = linear(k3, 64, 256)
    wvo, bvo = linear(k4, 256, 1)
    wao, bao = linear(k5, 256, 4)
    return dict(w1=w1, b1=b1, wv=wv, bv=bv, wa=wa, ba=ba,
                wvo=wvo, bvo=bvo, wao=wao, bao=bao)


def qnet_reference(x, p):
    """Pure-JAX reference of the torch forward, for sanity checking."""
    h = jnp.maximum(x @ p["w1"] + p["b1"], 0.0)
    v = jnp.maximum(h @ p["wv"] + p["bv"], 0.0)
    a = jnp.maximum(h @ p["wa"] + p["ba"], 0.0)
    value = v @ p["wvo"] + p["bvo"]
    adv = a @ p["wao"] + p["bao"]
    return value + adv - jnp.mean(adv, axis=0, keepdims=True)


if __name__ == "__main__":
    key = jax.random.PRNGKey(0)
    kx, kp = jax.random.split(key)

    # small batch, deliberately NOT a multiple of 8 -> exercises padded-row
    # masking in the batch-mean of the fused single-launch kernel.
    B = 100
    x = jax.random.normal(kx, (B, 8), jnp.float32)
    params = init_params(kp)
    q_ref = qnet_reference(x, params)

    # primary path: one fused kernel, one grid step
    q = jax.block_until_ready(qnet_forward(x, params))
    assert q.shape == (B, 4)
    assert jnp.allclose(q, q_ref, atol=1e-4, rtol=1e-4), "fused-path mismatch"

    # large-batch fallback path (forced small threshold to exercise it)
    q2 = jax.block_until_ready(qnet_forward(x, params, max_fused_rows=8, tile=32))
    assert q2.shape == (B, 4)
    assert jnp.allclose(q2, q_ref, atol=1e-4, rtol=1e-4), "tiled-path mismatch"

    print("KERNEL_OK")
</pallas_src>

<mosaic_0001>
module attributes {stable_mosaic.version = 11 : i64} {
  func.func @qnet_fused_kernel(%arg0: i32, %arg1: memref<104x8xf32, #tpu.memory_space<vmem>>, %arg2: memref<8x64xf32, #tpu.memory_space<vmem>>, %arg3: memref<1x64xf32, #tpu.memory_space<vmem>>, %arg4: memref<64x512xf32, #tpu.memory_space<vmem>>, %arg5: memref<1x512xf32, #tpu.memory_space<vmem>>, %arg6: memref<512x128xf32, #tpu.memory_space<vmem>>, %arg7: memref<1x128xf32, #tpu.memory_space<vmem>>, %arg8: memref<104x128xf32, #tpu.memory_space<vmem>>) attributes {dimension_semantics = [#tpu.dimension_semantics<arbitrary>], iteration_bounds = array<i64: 1>, scalar_prefetch = 0 : i64, scratch_operands = 0 : i64, tpu.core_type = #tpu.core_type<tc>, window_params = [{pipeline_mode = #tpu.pipeline_mode<synchronous>, transform_indices = @transform_0, window_bounds = array<i64: 104, 8>}, {pipeline_mode = #tpu.pipeline_mode<synchronous>, transform_indices = @transform_1, window_bounds = array<i64: 8, 64>}, {pipeline_mode = #tpu.pipeline_mode<synchronous>, transform_indices = @transform_2, window_bounds = array<i64: 1, 64>}, {pipeline_mode = #tpu.pipeline_mode<synchronous>, transform_indices = @transform_3, window_bounds = array<i64: 64, 512>}, {pipeline_mode = #tpu.pipeline_mode<synchronous>, transform_indices = @transform_4, window_bounds = array<i64: 1, 512>}, {pipeline_mode = #tpu.pipeline_mode<synchronous>, transform_indices = @transform_5, window_bounds = array<i64: 512, 128>}, {pipeline_mode = #tpu.pipeline_mode<synchronous>, transform_indices = @transform_6, window_bounds = array<i64: 1, 128>}, {pipeline_mode = #tpu.pipeline_mode<synchronous>, transform_indices = @transform_7, window_bounds = array<i64: 104, 128>}]} {
    %c0 = arith.constant 0 : index
    %c0_0 = arith.constant 0 : index
    %0 = vector.load %arg1[%c0, %c0_0] : memref<104x8xf32, #tpu.memory_space<vmem>>, vector<104x8xf32>
    %c0_1 = arith.constant 0 : index
    %c0_2 = arith.constant 0 : index
    %1 = vector.load %arg2[%c0_1, %c0_2] : memref<8x64xf32, #tpu.memory_space<vmem>>, vector<8x64xf32>
    %cst = arith.constant dense<0.000000e+00> : vector<104x64xf32>
    %2 = tpu.matmul %0, %1, %cst {dimension_numbers = #tpu.dot_dimension_numbers<[1], [0], [0], [1], [0, 0, 1, 1], [], []>} : vector<104x8xf32>, vector<8x64xf32>, vector<104x64xf32> -> vector<104x64xf32>
    %c0_3 = arith.constant 0 : index
    %c0_4 = arith.constant 0 : index
    %3 = vector.load %arg3[%c0_3, %c0_4] : memref<1x64xf32, #tpu.memory_space<vmem>>, vector<1x64xf32>
    %4 = vector.broadcast %3 : vector<1x64xf32> to vector<104x64xf32>
    %5 = arith.addf %2, %4 : vector<104x64xf32>
    %cst_5 = arith.constant 0.000000e+00 : f32
    %6 = vector.broadcast %cst_5 : f32 to vector<104x64xf32>
    %7 = arith.maximumf %5, %6 : vector<104x64xf32>
    %c0_6 = arith.constant 0 : index
    %c0_7 = arith.constant 0 : index
    %8 = vector.load %arg4[%c0_6, %c0_7] : memref<64x512xf32, #tpu.memory_space<vmem>>, vector<64x512xf32>
    %cst_8 = arith.constant dense<0.000000e+00> : vector<104x512xf32>
    %9 = tpu.matmul %7, %8, %cst_8 {dimension_numbers = #tpu.dot_dimension_numbers<[1], [0], [0], [1], [0, 0, 1, 1], [], []>} : vector<104x64xf32>, vector<64x512xf32>, vector<104x512xf32> -> vector<104x512xf32>
    %c0_9 = arith.constant 0 : index
    %c0_10 = arith.constant 0 : index
    %10 = vector.load %arg5[%c0_9, %c0_10] : memref<1x512xf32, #tpu.memory_space<vmem>>, vector<1x512xf32>
    %11 = vector.broadcast %10 : vector<1x512xf32> to vector<104x512xf32>
    %12 = arith.addf %9, %11 : vector<104x512xf32>
    %cst_11 = arith.constant 0.000000e+00 : f32
    %13 = vector.broadcast %cst_11 : f32 to vector<104x512xf32>
    %14 = arith.maximumf %12, %13 : vector<104x512xf32>
    %c0_12 = arith.constant 0 : index
    %c0_13 = arith.constant 0 : index
    %15 = vector.load %arg6[%c0_12, %c0_13] : memref<512x128xf32, #tpu.memory_space<vmem>>, vector<512x128xf32>
    %cst_14 = arith.constant dense<0.000000e+00> : vector<104x128xf32>
    %16 = tpu.matmul %14, %15, %cst_14 {dimension_numbers = #tpu.dot_dimension_numbers<[1], [0], [0], [1], [0, 0, 1, 1], [], []>} : vector<104x512xf32>, vector<512x128xf32>, vector<104x128xf32> -> vector<104x128xf32>
    %c0_15 = arith.constant 0 : index
    %c0_16 = arith.constant 0 : index
    %17 = vector.load %arg7[%c0_15, %c0_16] : memref<1x128xf32, #tpu.memory_space<vmem>>, vector<1x128xf32>
    %18 = vector.broadcast %17 : vector<1x128xf32> to vector<104x128xf32>
    %19 = arith.addf %16, %18 : vector<104x128xf32>
    %20 = tpu.iota {dimensions = array<i32: 0>} : vector<104x1xi32>
    %c100_i32 = arith.constant 100 : i32
    %21 = vector.broadcast %c100_i32 : i32 to vector<104x1xi32>
    %22 = arith.cmpi slt, %20, %21 : vector<104x1xi32>
    %23 = arith.extui %22 : vector<104x1xi1> to vector<104x1xi32>
    %24 = arith.sitofp %23 : vector<104x1xi32> to vector<104x1xf32>
    %25 = vector.broadcast %24 : vector<104x1xf32> to vector<104x128xf32>
    %26 = arith.mulf %19, %25 : vector<104x128xf32>
    %cst_17 = arith.constant dense<0.000000e+00> : vector<128xf32>
    %27 = vector.multi_reduction <add>, %26, %cst_17 [0] : vector<104x128xf32> to vector<128xf32>
    %28 = vector.shape_cast %27 : vector<128xf32> to vector<1x128xf32>
    %cst_18 = arith.constant 0.00999999977 : f32
    %29 = vector.broadcast %cst_18 : f32 to vector<1x128xf32>
    %30 = arith.mulf %28, %29 : vector<1x128xf32>
    %31 = vector.extract_strided_slice %19 {offsets = [0, 0], sizes = [104, 1], strides = [1, 1]} : vector<104x128xf32> to vector<104x1xf32>
    %32 = vector.broadcast %31 : vector<104x1xf32> to vector<104x128xf32>
    %33 = arith.addf %32, %19 : vector<104x128xf32>
    %34 = vector.broadcast %30 : vector<1x128xf32> to vector<104x128xf32>
    %35 = arith.subf %33, %34 : vector<104x128xf32>
    %c0_19 = arith.constant 0 : index
    %c0_20 = arith.constant 0 : index
    %36 = vector.load %arg8[%c0_19, %c0_20] : memref<104x128xf32, #tpu.memory_space<vmem>>, vector<104x128xf32>
    tpu.vector_store %arg8[%c0_19, %c0_20], %35 {strides = array<i32>} : memref<104x128xf32, #tpu.memory_space<vmem>>, vector<104x128xf32>,
    return
  }
  func.func @transform_0(%arg0: i32) -> (i32, i32) {
    %c0_i32 = arith.constant 0 : i32
    %c0_i32_0 = arith.constant 0 : i32
    %c0_i32_1 = arith.constant 0 : i32
    return %c0_i32, %c0_i32_0 : i32, i32
  }
  func.func @transform_1(%arg0: i32) -> (i32, i32) {
    %c0_i32 = arith.constant 0 : i32
    %c0_i32_0 = arith.constant 0 : i32
    %c0_i32_1 = arith.constant 0 : i32
    return %c0_i32, %c0_i32_0 : i32, i32
  }
  func.func @transform_2(%arg0: i32) -> (i32, i32) {
    %c0_i32 = arith.constant 0 : i32
    %c0_i32_0 = arith.constant 0 : i32
    %c0_i32_1 = arith.constant 0 : i32
    return %c0_i32, %c0_i32_0 : i32, i32
  }
  func.func @transform_3(%arg0: i32) -> (i32, i32) {
    %c0_i32 = arith.constant 0 : i32
    %c0_i32_0 = arith.constant 0 : i32
    %c0_i32_1 = arith.constant 0 : i32
    return %c0_i32, %c0_i32_0 : i32, i32
  }
  func.func @transform_4(%arg0: i32) -> (i32, i32) {
    %c0_i32 = arith.constant 0 : i32
    %c0_i32_0 = arith.constant 0 : i32
    %c0_i32_1 = arith.constant 0 : i32
    return %c0_i32, %c0_i32_0 : i32, i32
  }
  func.func @transform_5(%arg0: i32) -> (i32, i32) {
    %c0_i32 = arith.constant 0 : i32
    %c0_i32_0 = arith.constant 0 : i32
    %c0_i32_1 = arith.constant 0 : i32
    return %c0_i32, %c0_i32_0 : i32, i32
  }
  func.func @transform_6(%arg0: i32) -> (i32, i32) {
    %c0_i32 = arith.constant 0 : i32
    %c0_i32_0 = arith.constant 0 : i32
    %c0_i32_1 = arith.constant 0 : i32
    return %c0_i32, %c0_i32_0 : i32, i32
  }
  func.func @transform_7(%arg0: i32) -> (i32, i32) {
    %c0_i32 = arith.constant 0 : i32
    %c0_i32_0 = arith.constant 0 : i32
    %c0_i32_1 = arith.constant 0 : i32
    return %c0_i32, %c0_i32_0 : i32, i32
  }
}

</mosaic_0001>

<llo_original>
// kernel: tpu_custom_call.1
$region0: #{tpu_custom_call.1}
  #allocation0 [shape = 'u32[]', space=smem, size = 0x4, offset = 0x4, fixed_abs, tag = 'smem constant byte address 0x4 - core index']
  #allocation1 [shape = 'u32[144,128]{1,0:T(1,128)}', space=vmem, size = 0x12000, scoped, tag = 'internal scratch']
  %s0 = inlined_call_operand.vmem [shape: f32[104,8], index: 0, kind: input, shape index: {}]
  %s1 = inlined_call_operand.vmem [shape: f32[8,64], index: 1, kind: input, shape index: {}]
  %s2 = inlined_call_operand.vmem [shape: f32[1,64], index: 2, kind: input, shape index: {}]
  %s3 = inlined_call_operand.hbm [shape: f32[64,512], index: 3, kind: input, shape index: {}]
  %s4 = inlined_call_operand.vmem [shape: f32[1,512], index: 4, kind: input, shape index: {}]
  %s5 = inlined_call_operand.hbm [shape: f32[512,128], index: 5, kind: input, shape index: {}]
  %s6 = inlined_call_operand.vmem [shape: f32[1,128], index: 6, kind: input, shape index: {}]
  %s7 = inlined_call_operand.hbm [shape: f32[104,128], index: 7, kind: output, shape index: {}]
  %s8 = sld [smem:[#allocation0]]
  $region46: #{tpu_custom_call.1} parent=0
    _
  %s10 = ssub.s32 1, %s8
  %s11 = scalar_select 0, %s10, %s8
  $region1: #{tpu_custom_call.1} parent=0
    #allocation2 [shape = 'u8[131072]{0}', space=vmem, size = 0x20000, scoped, tag = 'input window, operand 3, single buffered']
    #allocation3 [shape = 's32[1]{0}', space=sflag, size = 0x4, scoped, tag = 'scoped memory for tpu_custom_call.1']
    #allocation4 [shape = 's32[1]{0}', space=sflag, size = 0x4, scoped, tag = 'scoped memory for tpu_custom_call.1']
    #allocation5 [shape = 'u8[262144]{0}', space=vmem, size = 0x40000, scoped, tag = 'input window, operand 5, single buffered']
    #allocation6 [shape = 's32[1]{0}', space=sflag, size = 0x4, scoped, tag = 'scoped memory for tpu_custom_call.1']
    #allocation7 [shape = 'u8[53248]{0}', space=vmem, size = 0xd000, scoped, tag = 'output window, operand 0, single buffered']
    %12 = vsyncpa [#allocation3], 0
    %13 = vsyncpa [#allocation6], 0
    %14 = vsyncpa [#allocation4], 0
    // Predicated region
    $region2: #{tpu_custom_call.1} parent=1 // pred_check
      _
    $region3: #{tpu_custom_call.1} parent=1 // pred_check_branch
      %16 = sbr.rel (0) target = $region5
    $region4: #{tpu_custom_call.1} parent=1 // pred_region
      _
    $region5: #{tpu_custom_call.1} parent=1 // pred_fallthru
      _
    // Predicated region
    $region6: #{tpu_custom_call.1} parent=1 // pred_check
      _
    $region7: #{tpu_custom_call.1} parent=1 // pred_check_branch
      %18 = sbr.rel (0) target = $region9
    $region8: #{tpu_custom_call.1} parent=1 // pred_region
      _
    $region9: #{tpu_custom_call.1} parent=1 // pred_fallthru
      _
    // Predicated region
    $region10: #{tpu_custom_call.1} parent=1 // pred_check
      _
    $region11: #{tpu_custom_call.1} parent=1 // pred_check_branch
      %20 = sbr.rel (0) target = $region13
    $region12: #{tpu_custom_call.1} parent=1 // pred_region
      _
    $region13: #{tpu_custom_call.1} parent=1 // pred_fallthru
      _
    // Predicated region
    $region14: #{tpu_custom_call.1} parent=1 // pred_check
      _
    $region15: #{tpu_custom_call.1} parent=1 // pred_check_branch
      %22 = sbr.rel (0) target = $region17
    $region16: #{tpu_custom_call.1} parent=1 // pred_region
      %s24 = ssub.s32 4096, 4096
      %25 = vsyncadd [#allocation3], %s24
      %s26 = sshll.u32 [#allocation2], 4
      %s27 = int_to_ptr.vmem [resolvable:$true] %s26
      %32 = dma.hbm_to_vmem [thread:$0]  %s3, 4096, %s27, [#allocation3], 512, 512, 32
    $region17: #{tpu_custom_call.1} parent=1 // pred_fallthru
      _
    // Predicated region
    $region18: #{tpu_custom_call.1} parent=1 // pred_check
      _
    $region19: #{tpu_custom_call.1} parent=1 // pred_check_branch
      %34 = sbr.rel (0) target = $region21
    $region20: #{tpu_custom_call.1} parent=1 // pred_region
      _
    $region21: #{tpu_custom_call.1} parent=1 // pred_fallthru
      _
    // Predicated region
    $region22: #{tpu_custom_call.1} parent=1 // pred_check
      _
    $region23: #{tpu_custom_call.1} parent=1 // pred_check_branch
      %36 = sbr.rel (0) target = $region25
    $region24: #{tpu_custom_call.1} parent=1 // pred_region
      %s38 = ssub.s32 8192, 8192
      %39 = vsyncadd [#allocation6], %s38
      %s40 = sshll.u32 [#allocation5], 4
      %s41 = int_to_ptr.vmem [resolvable:$true] %s40
      %46 = dma.hbm_to_vmem [thread:$0]  %s5, 8192, %s41, [#allocation6], 128, 128, 8
    $region25: #{tpu_custom_call.1} parent=1 // pred_fallthru
      _
    // Predicated region
    $region26: #{tpu_custom_call.1} parent=1 // pred_check
      _
    $region27: #{tpu_custom_call.1} parent=1 // pred_check_branch
      %48 = sbr.rel (0) target = $region29
    $region28: #{tpu_custom_call.1} parent=1 // pred_region
      _
    $region29: #{tpu_custom_call.1} parent=1 // pred_fallthru
      _
    // Predicated region
    $region30: #{tpu_custom_call.1} parent=1 // pred_check
      _
    $region31: #{tpu_custom_call.1} parent=1 // pred_check_branch
      %50 = sbr.rel (0) target = $region33
    $region32: #{tpu_custom_call.1} parent=1 // pred_region
      %51 = dma.done [#allocation3], 4096
    $region33: #{tpu_custom_call.1} parent=1 // pred_fallthru
      _
    // Predicated region
    $region34: #{tpu_custom_call.1} parent=1 // pred_check
      _
    $region35: #{tpu_custom_call.1} parent=1 // pred_check_branch
      %53 = sbr.rel (0) target = $region37
    $region36: #{tpu_custom_call.1} parent=1 // pred_region
      %54 = dma.done [#allocation6], 8192
    $region37: #{tpu_custom_call.1} parent=1 // pred_fallthru
      _
    %v55 = vld [vmem:[%s0] sm:$0xff]
    %v56 = vld [vmem:[%s0 + $0x8] sm:$0xff]
    %v57 = vld [vmem:[%s0 + $0x10] sm:$0xff]
    %v58 = vld [vmem:[%s0 + $0x18] sm:$0xff]
    %v59 = vld [vmem:[%s0 + $0x20] sm:$0xff]
    %v60 = vld [vmem:[%s0 + $0x28] sm:$0xff]
    %v61 = vld [vmem:[%s0 + $0x30] sm:$0xff]
    %v62 = vld [vmem:[%s0 + $0x38] sm:$0xff]
    %v63 = vld [vmem:[%s0 + $0x40] sm:$0xff]
    %v64 = vld [vmem:[%s0 + $0x48] sm:$0xff]
    %v65 = vld [vmem:[%s0 + $0x50] sm:$0xff]
    %v66 = vld [vmem:[%s0 + $0x58] sm:$0xff]
    %v67 = vld [vmem:[%s0 + $0x60] sm:$0xff]
    %v68 = vld [vmem:[%s1] sm:$0xff]
    %v69 = vld [vmem:[%s2] sm:$0x1]
    %v71 = vlaneseq
    %v72 = vshrl.u32 %v71, 7
    %v73 = vsub.s32 0, %v72
    %v74 = vrot.slane %v69, %v73
    %vm76 = vcmask 64512
    %v78 = vsel %vm76, %v55, 0
    %v81 = vsel %vm76, %v56, 0
    %v84 = vsel %vm76, %v57, 0
    %v87 = vsel %vm76, %v58, 0
    %v90 = vsel %vm76, %v59, 0
    %v93 = vsel %vm76, %v60, 0
    %v96 = vsel %vm76, %v61, 0
    %v99 = vsel %vm76, %v62, 0
    %v102 = vsel %vm76, %v63, 0
    %v105 = vsel %vm76, %v64, 0
    %v108 = vsel %vm76, %v65, 0
    %v111 = vsel %vm76, %v66, 0
    %v114 = vsel %vm76, %v67, 0
    %116 = vmatprep.subr.mxu0 0.0
    %117 = vmatpush1.msra.mxu0 %v68
    %118 = vmatprep.subr.mxu0 0.0
    %119 = vmatpush1.msra.mxu0 0.0
    %120 = vmatprep.subr.mxu0 0.0
    %121 = vmatpush1.msra.mxu0 0.0
    %122 = vmatprep.subr.mxu0 0.0
    %123 = vmatpush1.msra.mxu0 0.0
    %124 = vmatprep.subr.mxu0 0.0
    %125 = vmatpush1.msra.mxu0 0.0
    %126 = vmatprep.subr.mxu0 0.0
    %127 = vmatpush1.msra.mxu0 0.0
    %128 = vmatprep.subr.mxu0 0.0
    %129 = vmatpush1.msra.mxu0 0.0
    %130 = vmatprep.subr.mxu0 0.0
    %131 = vmatpush1.msra.mxu0 0.0
    %132 = vmatprep.subr.mxu0 0.0
    %133 = vmatpush1.msra.mxu0 0.0
    %134 = vmatprep.subr.mxu0 0.0
    %135 = vmatpush1.msra.mxu0 0.0
    %136 = vmatprep.subr.mxu0 0.0
    %137 = vmatpush1.msra.mxu0 0.0
    %138 = vmatprep.subr.mxu0 0.0
    %139 = vmatpush1.msra.mxu0 0.0
    %140 = vmatprep.subr.mxu0 0.0
    %141 = vmatpush1.msra.mxu0 0.0
    %142 = vmatprep.subr.mxu0 0.0
    %143 = vmatpush1.msra.mxu0 0.0
    %144 = vmatprep.subr.mxu0 0.0
    %145 = vmatpush1.msra.mxu0 0.0
    %146 = vmatprep.subr.mxu0 0.0
    %147 = vmatpush1.msra.mxu0 0.0
    %148 = vmatprep.subr.mxu0 0.0
    %149 = vmatpush1.msra.mxu0 0.0
    %150 = vmatprep.subr.mxu0 0.0
    %151 = vmatpush1.msra.mxu0 0.0
    %152 = vmatprep.subr.mxu0 0.0
    %153 = vmatpush1.msra.mxu0 0.0
    %154 = vmatprep.subr.mxu0 0.0
    %155 = vmatpush1.msra.mxu0 0.0
    %156 = vmatprep.subr.mxu0 0.0
    %157 = vmatpush1.msra.mxu0 0.0
    %158 = vmatprep.subr.mxu0 0.0
    %159 = vmatpush1.msra.mxu0 0.0
    %160 = vmatprep.subr.mxu0 0.0
    %161 = vmatpush1.msra.mxu0 0.0
    %162 = vmatprep.subr.mxu0 0.0
    %163 = vmatpush1.msra.mxu0 0.0
    %164 = vmatprep.subr.mxu0 0.0
    %165 = vmatpush1.msra.mxu0 0.0
    %166 = vmatprep.subr.mxu0 0.0
    %167 = vmatpush1.msra.mxu0 0.0
    %168 = vmatprep.subr.mxu0 0.0
    %169 = vmatpush1.msra.mxu0 0.0
    %170 = vmatprep.subr.mxu0 0.0
    %171 = vmatpush1.msra.mxu0 0.0
    %172 = vmatprep.subr.mxu0 0.0
    %173 = vmatpush1.msra.mxu0 0.0
    %174 = vmatprep.subr.mxu0 0.0
    %175 = vmatpush1.msra.mxu0 0.0
    %176 = vmatprep.subr.mxu0 0.0
    %177 = vmatpush1.msra.mxu0 0.0
    %178 = vmatprep.subr.mxu0 0.0
    %179 = vmatpush1.msra.mxu0 0.0
    %180 = vmatprep.mubr.f32.mxu0 0.0
    %181 = vmatmul.mubr.f32.gmra.mrb[0].mxu0 %v78
    %v182 = vpop.f32.mrb[0].mxu0
    %v183 = vadd.f32 %v74, %v182
    %v184 = vpop.f32.mrb[0].mxu0
    %185 = vmatprep.mubr.f32.mxu0 0.0
    %186 = vmatmul.mubr.f32.gmra.mrb[0].mxu0 %v81
    %v187 = vpop.f32.mrb[0].mxu0
    %v188 = vadd.f32 %v74, %v187
    %v189 = vpop.f32.mrb[0].mxu0
    %190 = vmatprep.mubr.f32.mxu0 0.0
    %191 = vmatmul.mubr.f32.gmra.mrb[0].mxu0 %v84
    %v192 = vpop.f32.mrb[0].mxu0
    %v193 = vadd.f32 %v74, %v192
    %v194 = vpop.f32.mrb[0].mxu0
    %195 = vmatprep.mubr.f32.mxu0 0.0
    %196 = vmatmul.mubr.f32.gmra.mrb[0].mxu0 %v87
    %v197 = vpop.f32.mrb[0].mxu0
    %v198 = vadd.f32 %v74, %v197
    %v199 = vpop.f32.mrb[0].mxu0
    %200 = vmatprep.mubr.f32.mxu0 0.0
    %201 = vmatmul.mubr.f32.gmra.mrb[0].mxu0 %v90
    %v202 = vpop.f32.mrb[0].mxu0
    %v203 = vadd.f32 %v74, %v202
    %v204 = vpop.f32.mrb[0].mxu0
    %205 = vmatprep.mubr.f32.mxu0 0.0
    %206 = vmatmul.mubr.f32.gmra.mrb[0].mxu0 %v93
    %v207 = vpop.f32.mrb[0].mxu0
    %v208 = vadd.f32 %v74, %v207
    %v209 = vpop.f32.mrb[0].mxu0
    %210 = vmatprep.mubr.f32.mxu0 0.0
    %211 = vmatmul.mubr.f32.gmra.mrb[0].mxu0 %v96
    %v212 = vpop.f32.mrb[0].mxu0
    %v213 = vadd.f32 %v74, %v212
    %v214 = vpop.f32.mrb[0].mxu0
    %215 = vmatprep.mubr.f32.mxu0 0.0
    %216 = vmatmul.mubr.f32.gmra.mrb[0].mxu0 %v99
    %v217 = vpop.f32.mrb[0].mxu0
    %v218 = vadd.f32 %v74, %v217
    %v219 = vpop.f32.mrb[0].mxu0
    %220 = vmatprep.mubr.f32.mxu0 0.0
    %221 = vmatmul.mubr.f32.gmra.mrb[0].mxu0 %v102
    %v222 = vpop.f32.mrb[0].mxu0
    %v223 = vadd.f32 %v74, %v222
    %v224 = vpop.f32.mrb[0].mxu0
    %225 = vmatprep.mubr.f32.mxu0 0.0
    %226 = vmatmul.mubr.f32.gmra.mrb[0].mxu0 %v105
    %v227 = vpop.f32.mrb[0].mxu0
    %v228 = vadd.f32 %v74, %v227
    %v229 = vpop.f32.mrb[0].mxu0
    %230 = vmatprep.mubr.f32.mxu0 0.0
    %231 = vmatmul.mubr.f32.gmra.mrb[0].mxu0 %v108
    %v232 = vpop.f32.mrb[0].mxu0
    %v233 = vadd.f32 %v74, %v232
    %v234 = vpop.f32.mrb[0].mxu0
    %235 = vmatprep.mubr.f32.mxu0 0.0
    %236 = vmatmul.mubr.f32.gmra.mrb[0].mxu0 %v111
    %v237 = vpop.f32.mrb[0].mxu0
    %v238 = vadd.f32 %v74, %v237
    %v239 = vpop.f32.mrb[0].mxu0
    %240 = vmatprep.mubr.f32.mxu0 0.0
    %241 = vmatmul.mubr.f32.gmra.mrb[0].mxu0 %v114
    %v242 = vpop.f32.mrb[0].mxu0
    %v243 = vadd.f32 %v74, %v242
    %v244 = vpop.f32.mrb[0].mxu0
    %245 = vdwg.mxu0
    %v246 = vmax.f32 %v183, 0.0
    %v247 = vmax.f32 %v188, 0.0
    %v248 = vmax.f32 %v193, 0.0
    %v249 = vmax.f32 %v198, 0.0
    %v250 = vmax.f32 %v203, 0.0
    %v251 = vmax.f32 %v208, 0.0
    %v252 = vmax.f32 %v213, 0.0
    %v253 = vmax.f32 %v218, 0.0
    %v254 = vmax.f32 %v223, 0.0
    %v255 = vmax.f32 %v228, 0.0
    %v256 = vmax.f32 %v233, 0.0
    %v257 = vmax.f32 %v238, 0.0
    %v258 = vmax.f32 %v243, 0.0
    %v259 = vld [vmem:[#allocation2] sm:$0xff]
    %v260 = vld [vmem:[#allocation2 + $0x8] sm:$0xff]
    %v261 = vld [vmem:[#allocation2 + $0x10] sm:$0xff]
    %v262 = vld [vmem:[#allocation2 + $0x18] sm:$0xff]
    %v263 = vld [vmem:[#allocation2 + $0x20] sm:$0xff]
    %v264 = vld [vmem:[#allocation2 + $0x28] sm:$0xff]
    %v265 = vld [vmem:[#allocation2 + $0x30] sm:$0xff]
    %v266 = vld [vmem:[#allocation2 + $0x38] sm:$0xff]
    %v267 = vld [vmem:[#allocation2 + $0x40] sm:$0xff]
    %v268 = vld [vmem:[#allocation2 + $0x48] sm:$0xff]
    %v269 = vld [vmem:[#allocation2 + $0x50] sm:$0xff]
    %v270 = vld [vmem:[#allocation2 + $0x58] sm:$0xff]
    %v271 = vld [vmem:[#allocation2 + $0x60] sm:$0xff]
    %v272 = vld [vmem:[#allocation2 + $0x68] sm:$0xff]
    %v273 = vld [vmem:[#allocation2 + $0x70] sm:$0xff]
    %v274 = vld [vmem:[#allocation2 + $0x78] sm:$0xff]
    %v275 = vld [vmem:[#allocation2 + $0x80] sm:$0xff]
    %v276 = vld [vmem:[#allocation2 + $0x88] sm:$0xff]
    %v277 = vld [vmem:[#allocation2 + $0x90] sm:$0xff]
    %v278 = vld [vmem:[#allocation2 + $0x98] sm:$0xff]
    %v279 = vld [vmem:[#allocation2 + $0xa0] sm:$0xff]
    %v280 = vld [vmem:[#allocation2 + $0xa8] sm:$0xff]
    %v281 = vld [vmem:[#allocation2 + $0xb0] sm:$0xff]
    %v282 = vld [vmem:[#allocation2 + $0xb8] sm:$0xff]
    %v283 = vld [vmem:[#allocation2 + $0xc0] sm:$0xff]
    %v284 = vld [vmem:[#allocation2 + $0xc8] sm:$0xff]
    %v285 = vld [vmem:[#allocation2 + $0xd0] sm:$0xff]
    %v286 = vld [vmem:[#allocation2 + $0xd8] sm:$0xff]
    %v287 = vld [vmem:[#allocation2 + $0xe0] sm:$0xff]
    %v288 = vld [vmem:[#allocation2 + $0xe8] sm:$0xff]
    %v289 = vld [vmem:[#allocation2 + $0xf0] sm:$0xff]
    %v290 = vld [vmem:[#allocation2 + $0xf8] sm:$0xff]
    %v291 = vld [vmem:[%s4] sm:$0xf]
    %v293 = vlaneseq
    %v294 = vshrl.u32 %v293, 7
    %v295 = vsub.s32 0, %v294
    %v296 = vrot.slane %v291, %v295
    %v297 = vlaneseq
    %v298 = vshrl.u32 %v297, 7
    %v299 = vsub.s32 1, %v298
    %v300 = vrot.slane %v291, %v299
    %v301 = vlaneseq
    %v302 = vshrl.u32 %v301, 7
    %v303 = vsub.s32 2, %v302
    %v304 = vrot.slane %v291, %v303
    %v305 = vlaneseq
    %v306 = vshrl.u32 %v305, 7
    %v307 = vsub.s32 3, %v306
    %v308 = vrot.slane %v291, %v307
    %vm313 = vcmask 523264
    %v315 = vsel %vm313, %v246, 0
    %v318 = vsel %vm313, %v247, 0
    %v321 = vsel %vm313, %v248, 0
    %v324 = vsel %vm313, %v249, 0
    %v327 = vsel %vm313, %v250, 0
    %v330 = vsel %vm313, %v251, 0
    %v333 = vsel %vm313, %v252, 0
    %v336 = vsel %vm313, %v253, 0
    %v339 = vsel %vm313, %v254, 0
    %v342 = vsel %vm313, %v255, 0
    %v345 = vsel %vm313, %v256, 0
    %v348 = vsel %vm313, %v257, 0
    %v351 = vsel %vm313, %v258, 0
    %353 = vmatprep.subr.mxu0 %v260
    %354 = vmatpush1.msra.mxu0 %v259
    %355 = vmatprep.subr.mxu0 %v264
    %356 = vmatpush1.msra.mxu0 %v263
    %357 = vmatprep.subr.mxu0 %v268
    %358 = vmatpush1.msra.mxu0 %v267
    %359 = vmatprep.subr.mxu0 %v272
    %360 = vmatpush1.msra.mxu0 %v271
    %361 = vmatprep.subr.mxu0 %v276
    %362 = vmatpush1.msra.mxu0 %v275
    %363 = vmatprep.subr.mxu0 %v280
    %364 = vmatpush1.msra.mxu0 %v279
    %365 = vmatprep.subr.mxu0 %v284
    %366 = vmatpush1.msra.mxu0 %v283
    %367 = vmatprep.subr.mxu0 %v288
    %368 = vmatpush1.msra.mxu0 %v287
    %369 = vmatprep.subr.mxu0 0.0
    %370 = vmatpush1.msra.mxu0 0.0
    %371 = vmatprep.subr.mxu0 0.0
    %372 = vmatpush1.msra.mxu0 0.0
    %373 = vmatprep.subr.mxu0 0.0
    %374 = vmatpush1.msra.mxu0 0.0
    %375 = vmatprep.subr.mxu0 0.0
    %376 = vmatpush1.msra.mxu0 0.0
    %377 = vmatprep.subr.mxu0 0.0
    %378 = vmatpush1.msra.mxu0 0.0
    %379 = vmatprep.subr.mxu0 0.0
    %380 = vmatpush1.msra.mxu0 0.0
    %381 = vmatprep.subr.mxu0 0.0
    %382 = vmatpush1.msra.mxu0 0.0
    %383 = vmatprep.subr.mxu0 0.0
    %384 = vmatpush1.msra.mxu0 0.0
    %385 = vmatprep.subr.mxu0 0.0
    %386 = vmatpush1.msra.mxu0 0.0
    %387 = vmatprep.subr.mxu0 0.0
    %388 = vmatpush1.msra.mxu0 0.0
    %389 = vmatprep.subr.mxu0 0.0
    %390 = vmatpush1.msra.mxu0 0.0
    %391 = vmatprep.subr.mxu0 0.0
    %392 = vmatpush1.msra.mxu0 0.0
    %393 = vmatprep.subr.mxu0 0.0
    %394 = vmatpush1.msra.mxu0 0.0
    %395 = vmatprep.subr.mxu0 0.0
    %396 = vmatpush1.msra.mxu0 0.0
    %397 = vmatprep.subr.mxu0 0.0
    %398 = vmatpush1.msra.mxu0 0.0
    %399 = vmatprep.subr.mxu0 0.0
    %400 = vmatpush1.msra.mxu0 0.0
    %401 = vmatprep.subr.mxu0 0.0
    %402 = vmatpush1.msra.mxu0 0.0
    %403 = vmatprep.subr.mxu0 0.0
    %404 = vmatpush1.msra.mxu0 0.0
    %405 = vmatprep.subr.mxu0 0.0
    %406 = vmatpush1.msra.mxu0 0.0
    %407 = vmatprep.subr.mxu0 0.0
    %408 = vmatpush1.msra.mxu0 0.0
    %409 = vmatprep.subr.mxu0 0.0
    %410 = vmatpush1.msra.mxu0 0.0
    %411 = vmatprep.subr.mxu0 0.0
    %412 = vmatpush1.msra.mxu0 0.0
    %413 = vmatprep.subr.mxu0 0.0
    %414 = vmatpush1.msra.mxu0 0.0
    %415 = vmatprep.subr.mxu0 0.0
    %416 = vmatpush1.msra.mxu0 0.0
    %417 = vmatprep.mubr.f32.mxu0 0.0
    %418 = vmatmul.mubr.f32.gmra.mrb[0].mxu0 %v315
    %v419 = vpop.f32.mrb[0].mxu0
    %v420 = vadd.f32 %v296, %v419
    %v421 = vpop.f32.mrb[0].mxu0
    %v422 = vadd.f32 %v300, %v421
    %423 = vmatprep.mubr.f32.mxu0 0.0
    %424 = vmatmul.mubr.f32.gmra.mrb[0].mxu0 %v318
    %v425 = vpop.f32.mrb[0].mxu0
    %v426 = vadd.f32 %v296, %v425
    %v427 = vpop.f32.mrb[0].mxu0
    %v428 = vadd.f32 %v300, %v427
    %429 = vmatprep.mubr.f32.mxu0 0.0
    %430 = vmatmul.mubr.f32.gmra.mrb[0].mxu0 %v321
    %v431 = vpop.f32.mrb[0].mxu0
    %v432 = vadd.f32 %v296, %v431
    %v433 = vpop.f32.mrb[0].mxu0
    %v434 = vadd.f32 %v300, %v433
    %435 = vmatprep.mubr.f32.mxu0 0.0
    %436 = vmatmul.mubr.f32.gmra.mrb[0].mxu0 %v324
    %v437 = vpop.f32.mrb[0].mxu0
    %v438 = vadd.f32 %v296, %v437
    %v439 = vpop.f32.mrb[0].mxu0
    %v440 = vadd.f32 %v300, %v439
    %441 = vmatprep.mubr.f32.mxu0 0.0
    %442 = vmatmul.mubr.f32.gmra.mrb[0].mxu0 %v327
    %v443 = vpop.f32.mrb[0].mxu0
    %v444 = vadd.f32 %v296, %v443
    %v445 = vpop.f32.mrb[0].mxu0
    %v446 = vadd.f32 %v300, %v445
    %447 = vmatprep.mubr.f32.mxu0 0.0
    %448 = vmatmul.mubr.f32.gmra.mrb[0].mxu0 %v330
    %v449 = vpop.f32.mrb[0].mxu0
    %v450 = vadd.f32 %v296, %v449
    %v451 = vpop.f32.mrb[0].mxu0
    %v452 = vadd.f32 %v300, %v451
    %453 = vmatprep.mubr.f32.mxu0 0.0
    %454 = vmatmul.mubr.f32.gmra.mrb[0].mxu0 %v333
    %v455 = vpop.f32.mrb[0].mxu0
    %v456 = vadd.f32 %v296, %v455
    %v457 = vpop.f32.mrb[0].mxu0
    %v458 = vadd.f32 %v300, %v457
    %459 = vmatprep.mubr.f32.mxu0 0.0
    %460 = vmatmul.mubr.f32.gmra.mrb[0].mxu0 %v336
    %v461 = vpop.f32.mrb[0].mxu0
    %v462 = vadd.f32 %v296, %v461
    %v463 = vpop.f32.mrb[0].mxu0
    %v464 = vadd.f32 %v300, %v463
    %465 = vmatprep.mubr.f32.mxu0 0.0
    %466 = vmatmul.mubr.f32.gmra.mrb[0].mxu0 %v339
    %v467 = vpop.f32.mrb[0].mxu0
    %v468 = vadd.f32 %v296, %v467
    %v469 = vpop.f32.mrb[0].mxu0
    %v470 = vadd.f32 %v300, %v469
    %471 = vmatprep.mubr.f32.mxu0 0.0
    %472 = vmatmul.mubr.f32.gmra.mrb[0].mxu0 %v342
    %v473 = vpop.f32.mrb[0].mxu0
    %v474 = vadd.f32 %v296, %v473
    %v475 = vpop.f32.mrb[0].mxu0
    %v476 = vadd.f32 %v300, %v475
    %477 = vmatprep.mubr.f32.mxu0 0.0
    %478 = vmatmul.mubr.f32.gmra.mrb[0].mxu0 %v345
    %v479 = vpop.f32.mrb[0].mxu0
    %v480 = vadd.f32 %v296, %v479
    %v481 = vpop.f32.mrb[0].mxu0
    %v482 = vadd.f32 %v300, %v481
    %483 = vmatprep.mubr.f32.mxu0 0.0
    %484 = vmatmul.mubr.f32.gmra.mrb[0].mxu0 %v348
    %v485 = vpop.f32.mrb[0].mxu0
    %v486 = vadd.f32 %v296, %v485
    %v487 = vpop.f32.mrb[0].mxu0
    %v488 = vadd.f32 %v300, %v487
    %489 = vmatprep.mubr.f32.mxu0 0.0
    %490 = vmatmul.mubr.f32.gmra.mrb[0].mxu0 %v351
    %v491 = vpop.f32.mrb[0].mxu0
    %v492 = vadd.f32 %v296, %v491
    %v493 = vpop.f32.mrb[0].mxu0
    %v494 = vadd.f32 %v300, %v493
    %495 = vdwg.mxu0
    %496 = vmatprep.subr.mxu0 %v262
    %497 = vmatpush1.msra.mxu0 %v261
    %498 = vmatprep.subr.mxu0 %v266
    %499 = vmatpush1.msra.mxu0 %v265
    %500 = vmatprep.subr.mxu0 %v270
    %501 = vmatpush1.msra.mxu0 %v269
    %502 = vmatprep.subr.mxu0 %v274
    %503 = vmatpush1.msra.mxu0 %v273
    %504 = vmatprep.subr.mxu0 %v278
    %505 = vmatpush1.msra.mxu0 %v277
    %506 = vmatprep.subr.mxu0 %v282
    %507 = vmatpush1.msra.mxu0 %v281
    %508 = vmatprep.subr.mxu0 %v286
    %509 = vmatpush1.msra.mxu0 %v285
    %510 = vmatprep.subr.mxu0 %v290
    %511 = vmatpush1.msra.mxu0 %v289
    %512 = vmatprep.subr.mxu0 0.0
    %513 = vmatpush1.msra.mxu0 0.0
    %514 = vmatprep.subr.mxu0 0.0
    %515 = vmatpush1.msra.mxu0 0.0
    %516 = vmatprep.subr.mxu0 0.0
    %517 = vmatpush1.msra.mxu0 0.0
    %518 = vmatprep.subr.mxu0 0.0
    %519 = vmatpush1.msra.mxu0 0.0
    %520 = vmatprep.subr.mxu0 0.0
    %521 = vmatpush1.msra.mxu0 0.0
    %522 = vmatprep.subr.mxu0 0.0
    %523 = vmatpush1.msra.mxu0 0.0
    %524 = vmatprep.subr.mxu0 0.0
    %525 = vmatpush1.msra.mxu0 0.0
    %526 = vmatprep.subr.mxu0 0.0
    %527 = vmatpush1.msra.mxu0 0.0
    %528 = vmatprep.subr.mxu0 0.0
    %529 = vmatpush1.msra.mxu0 0.0
    %530 = vmatprep.subr.mxu0 0.0
    %531 = vmatpush1.msra.mxu0 0.0
    %532 = vmatprep.subr.mxu0 0.0
    %533 = vmatpush1.msra.mxu0 0.0
    %534 = vmatprep.subr.mxu0 0.0
    %535 = vmatpush1.msra.mxu0 0.0
    %536 = vmatprep.subr.mxu0 0.0
    %537 = vmatpush1.msra.mxu0 0.0
    %538 = vmatprep.subr.mxu0 0.0
    %539 = vmatpush1.msra.mxu0 0.0
    %540 = vmatprep.subr.mxu0 0.0
    %541 = vmatpush1.msra.mxu0 0.0
    %542 = vmatprep.subr.mxu0 0.0
    %543 = vmatpush1.msra.mxu0 0.0
    %544 = vmatprep.subr.mxu0 0.0
    %545 = vmatpush1.msra.mxu0 0.0
    %546 = vmatprep.subr.mxu0 0.0
    %547 = vmatpush1.msra.mxu0 0.0
    %548 = vmatprep.subr.mxu0 0.0
    %549 = vmatpush1.msra.mxu0 0.0
    %550 = vmatprep.subr.mxu0 0.0
    %551 = vmatpush1.msra.mxu0 0.0
    %552 = vmatprep.subr.mxu0 0.0
    %553 = vmatpush1.msra.mxu0 0.0
    %554 = vmatprep.subr.mxu0 0.0
    %555 = vmatpush1.msra.mxu0 0.0
    %556 = vmatprep.subr.mxu0 0.0
    %557 = vmatpush1.msra.mxu0 0.0
    %558 = vmatprep.subr.mxu0 0.0
    %559 = vmatpush1.msra.mxu0 0.0
    %560 = vmatprep.mubr.f32.mxu0 0.0
    %561 = vmatmul.mubr.f32.gmra.mrb[0].mxu0 %v315
    %v562 = vpop.f32.mrb[0].mxu0
    %v563 = vadd.f32 %v304, %v562
    %v564 = vpop.f32.mrb[0].mxu0
    %v565 = vadd.f32 %v308, %v564
    %566 = vmatprep.mubr.f32.mxu0 0.0
    %567 = vmatmul.mubr.f32.gmra.mrb[0].mxu0 %v318
    %v568 = vpop.f32.mrb[0].mxu0
    %v569 = vadd.f32 %v304, %v568
    %v570 = vpop.f32.mrb[0].mxu0
    %v571 = vadd.f32 %v308, %v570
    %572 = vmatprep.mubr.f32.mxu0 0.0
    %573 = vmatmul.mubr.f32.gmra.mrb[0].mxu0 %v321
    %v574 = vpop.f32.mrb[0].mxu0
    %v575 = vadd.f32 %v304, %v574
    %v576 = vpop.f32.mrb[0].mxu0
    %v577 = vadd.f32 %v308, %v576
    %578 = vmatprep.mubr.f32.mxu0 0.0
    %579 = vmatmul.mubr.f32.gmra.mrb[0].mxu0 %v324
    %v580 = vpop.f32.mrb[0].mxu0
    %v581 = vadd.f32 %v304, %v580
    %v582 = vpop.f32.mrb[0].mxu0
    %v583 = vadd.f32 %v308, %v582
    %584 = vmatprep.mubr.f32.mxu0 0.0
    %585 = vmatmul.mubr.f32.gmra.mrb[0].mxu0 %v327
    %v586 = vpop.f32.mrb[0].mxu0
    %v587 = vadd.f32 %v304, %v586
    %v588 = vpop.f32.mrb[0].mxu0
    %v589 = vadd.f32 %v308, %v588
    %590 = vmatprep.mubr.f32.mxu0 0.0
    %591 = vmatmul.mubr.f32.gmra.mrb[0].mxu0 %v330
    %v592 = vpop.f32.mrb[0].mxu0
    %v593 = vadd.f32 %v304, %v592
    %v594 = vpop.f32.mrb[0].mxu0
    %v595 = vadd.f32 %v308, %v594
    %596 = vmatprep.mubr.f32.mxu0 0.0
    %597 = vmatmul.mubr.f32.gmra.mrb[0].mxu0 %v333
    %v598 = vpop.f32.mrb[0].mxu0
    %v599 = vadd.f32 %v304, %v598
    %v600 = vpop.f32.mrb[0].mxu0
    %v601 = vadd.f32 %v308, %v600
    %602 = vmatprep.mubr.f32.mxu0 0.0
    %603 = vmatmul.mubr.f32.gmra.mrb[0].mxu0 %v336
    %v604 = vpop.f32.mrb[0].mxu0
    %v605 = vadd.f32 %v304, %v604
    %v606 = vpop.f32.mrb[0].mxu0
    %v607 = vadd.f32 %v308, %v606
    %608 = vmatprep.mubr.f32.mxu0 0.0
    %609 = vmatmul.mubr.f32.gmra.mrb[0].mxu0 %v339
    %v610 = vpop.f32.mrb[0].mxu0
    %v611 = vadd.f32 %v304, %v610
    %v612 = vpop.f32.mrb[0].mxu0
    %v613 = vadd.f32 %v308, %v612
    %614 = vmatprep.mubr.f32.mxu0 0.0
    %615 = vmatmul.mubr.f32.gmra.mrb[0].mxu0 %v342
    %v616 = vpop.f32.mrb[0].mxu0
    %v617 = vadd.f32 %v304, %v616
    %v618 = vpop.f32.mrb[0].mxu0
    %v619 = vadd.f32 %v308, %v618
    %620 = vmatprep.mubr.f32.mxu0 0.0
    %621 = vmatmul.mubr.f32.gmra.mrb[0].mxu0 %v345
    %v622 = vpop.f32.mrb[0].mxu0
    %v623 = vadd.f32 %v304, %v622
    %v624 = vpop.f32.mrb[0].mxu0
    %v625 = vadd.f32 %v308, %v624
    %626 = vmatprep.mubr.f32.mxu0 0.0
    %627 = vmatmul.mubr.f32.gmra.mrb[0].mxu0 %v348
    %v628 = vpop.f32.mrb[0].mxu0
    %v629 = vadd.f32 %v304, %v628
    %v630 = vpop.f32.mrb[0].mxu0
    %v631 = vadd.f32 %v308, %v630
    %632 = vmatprep.mubr.f32.mxu0 0.0
    %633 = vmatmul.mubr.f32.gmra.mrb[0].mxu0 %v351
    %v634 = vpop.f32.mrb[0].mxu0
    %v635 = vadd.f32 %v304, %v634
    %v636 = vpop.f32.mrb[0].mxu0
    %v637 = vadd.f32 %v308, %v636
    %638 = vdwg.mxu0
    %v639 = vmax.f32 %v420, 0.0
    %v640 = vmax.f32 %v422, 0.0
    %v641 = vmax.f32 %v563, 0.0
    %v642 = vmax.f32 %v565, 0.0
    %v643 = vmax.f32 %v426, 0.0
    %v644 = vmax.f32 %v428, 0.0
    %v645 = vmax.f32 %v569, 0.0
    %v646 = vmax.f32 %v571, 0.0
    %v647 = vmax.f32 %v432, 0.0
    %v648 = vmax.f32 %v434, 0.0
    %v649 = vmax.f32 %v575, 0.0
    %v650 = vmax.f32 %v577, 0.0
    %v651 = vmax.f32 %v438, 0.0
    %v652 = vmax.f32 %v440, 0.0
    %v653 = vmax.f32 %v581, 0.0
    %v654 = vmax.f32 %v583, 0.0
    %v655 = vmax.f32 %v444, 0.0
    %v656 = vmax.f32 %v446, 0.0
    %v657 = vmax.f32 %v587, 0.0
    %v658 = vmax.f32 %v589, 0.0
    %v659 = vmax.f32 %v450, 0.0
    %v660 = vmax.f32 %v452, 0.0
    %v661 = vmax.f32 %v593, 0.0
    %v662 = vmax.f32 %v595, 0.0
    %v663 = vmax.f32 %v456, 0.0
    %v664 = vmax.f32 %v458, 0.0
    %v665 = vmax.f32 %v599, 0.0
    %v666 = vmax.f32 %v601, 0.0
    %v667 = vmax.f32 %v462, 0.0
    %v668 = vmax.f32 %v464, 0.0
    %v669 = vmax.f32 %v605, 0.0
    %v670 = vmax.f32 %v607, 0.0
    %v671 = vmax.f32 %v468, 0.0
    %v672 = vmax.f32 %v470, 0.0
    %v673 = vmax.f32 %v611, 0.0
    %v674 = vmax.f32 %v613, 0.0
    %v675 = vmax.f32 %v474, 0.0
    %v676 = vmax.f32 %v476, 0.0
    %v677 = vmax.f32 %v617, 0.0
    %v678 = vmax.f32 %v619, 0.0
    %v679 = vmax.f32 %v480, 0.0
    %v680 = vmax.f32 %v482, 0.0
    %v681 = vmax.f32 %v623, 0.0
    %v682 = vmax.f32 %v625, 0.0
    %v683 = vmax.f32 %v486, 0.0
    %v684 = vmax.f32 %v488, 0.0
    %v685 = vmax.f32 %v629, 0.0
    %v686 = vmax.f32 %v631, 0.0
    %v687 = vmax.f32 %v492, 0.0
    %v688 = vmax.f32 %v494, 0.0
    %v689 = vmax.f32 %v635, 0.0
    %v690 = vmax.f32 %v637, 0.0
    %v691 = vld [vmem:[#allocation5] sm:$0xff]
    %v692 = vld [vmem:[#allocation5 + $0x8] sm:$0xff]
    %v693 = vld [vmem:[#allocation5 + $0x10] sm:$0xff]
    %v694 = vld [vmem:[#allocation5 + $0x18] sm:$0xff]
    %v695 = vld [vmem:[#allocation5 + $0x20] sm:$0xff]
    %v696 = vld [vmem:[#allocation5 + $0x28] sm:$0xff]
    %v697 = vld [vmem:[#allocation5 + $0x30] sm:$0xff]
    %v698 = vld [vmem:[#allocation5 + $0x38] sm:$0xff]
    %v699 = vld [vmem:[#allocation5 + $0x40] sm:$0xff]
    %v700 = vld [vmem:[#allocation5 + $0x48] sm:$0xff]
    %v701 = vld [vmem:[#allocation5 + $0x50] sm:$0xff]
    %v702 = vld [vmem:[#allocation5 + $0x58] sm:$0xff]
    %v703 = vld [vmem:[#allocation5 + $0x60] sm:$0xff]
    %v704 = vld [vmem:[#allocation5 + $0x68] sm:$0xff]
    %v705 = vld [vmem:[#allocation5 + $0x70] sm:$0xff]
    %v706 = vld [vmem:[#allocation5 + $0x78] sm:$0xff]
    %v707 = vld [vmem:[#allocation5 + $0x80] sm:$0xff]
    %v708 = vld [vmem:[#allocation5 + $0x88] sm:$0xff]
    %v709 = vld [vmem:[#allocation5 + $0x90] sm:$0xff]
    %v710 = vld [vmem:[#allocation5 + $0x98] sm:$0xff]
    %v711 = vld [vmem:[#allocation5 + $0xa0] sm:$0xff]
    %v712 = vld [vmem:[#allocation5 + $0xa8] sm:$0xff]
    %v713 = vld [vmem:[#allocation5 + $0xb0] sm:$0xff]
    %v714 = vld [vmem:[#allocation5 + $0xb8] sm:$0xff]
    %v715 = vld [vmem:[#allocation5 + $0xc0] sm:$0xff]
    %v716 = vld [vmem:[#allocation5 + $0xc8] sm:$0xff]
    %v717 = vld [vmem:[#allocation5 + $0xd0] sm:$0xff]
    %v718 = vld [vmem:[#allocation5 + $0xd8] sm:$0xff]
    %v719 = vld [vmem:[#allocation5 + $0xe0] sm:$0xff]
    %v720 = vld [vmem:[#allocation5 + $0xe8] sm:$0xff]
    %v721 = vld [vmem:[#allocation5 + $0xf0] sm:$0xff]
    %v722 = vld [vmem:[#allocation5 + $0xf8] sm:$0xff]
    %v723 = vld [vmem:[#allocation5 + $0x100] sm:$0xff]
    %v724 = vld [vmem:[#allocation5 + $0x108] sm:$0xff]
    %v725 = vld [vmem:[#allocation5 + $0x110] sm:$0xff]
    %v726 = vld [vmem:[#allocation5 + $0x118] sm:$0xff]
    %v727 = vld [vmem:[#allocation5 + $0x120] sm:$0xff]
    %v728 = vld [vmem:[#allocation5 + $0x128] sm:$0xff]
    %v729 = vld [vmem:[#allocation5 + $0x130] sm:$0xff]
    %v730 = vld [vmem:[#allocation5 + $0x138] sm:$0xff]
    %v731 = vld [vmem:[#allocation5 + $0x140] sm:$0xff]
    %v732 = vld [vmem:[#allocation5 + $0x148] sm:$0xff]
    %v733 = vld [vmem:[#allocation5 + $0x150] sm:$0xff]
    %v734 = vld [vmem:[#allocation5 + $0x158] sm:$0xff]
    %v735 = vld [vmem:[#allocation5 + $0x160] sm:$0xff]
    %v736 = vld [vmem:[#allocation5 + $0x168] sm:$0xff]
    %v737 = vld [vmem:[#allocation5 + $0x170] sm:$0xff]
    %v738 = vld [vmem:[#allocation5 + $0x178] sm:$0xff]
    %v739 = vld [vmem:[#allocation5 + $0x180] sm:$0xff]
    %v740 = vld [vmem:[#allocation5 + $0x188] sm:$0xff]
    %v741 = vld [vmem:[#allocation5 + $0x190] sm:$0xff]
    %v742 = vld [vmem:[#allocation5 + $0x198] sm:$0xff]
    %v743 = vld [vmem:[#allocation5 + $0x1a0] sm:$0xff]
    %v744 = vld [vmem:[#allocation5 + $0x1a8] sm:$0xff]
    %v745 = vld [vmem:[#allocation5 + $0x1b0] sm:$0xff]
    %v746 = vld [vmem:[#allocation5 + $0x1b8] sm:$0xff]
    %v747 = vld [vmem:[#allocation5 + $0x1c0] sm:$0xff]
    %v748 = vld [vmem:[#allocation5 + $0x1c8] sm:$0xff]
    %v749 = vld [vmem:[#allocation5 + $0x1d0] sm:$0xff]
    %v750 = vld [vmem:[#allocation5 + $0x1d8] sm:$0xff]
    %v751 = vld [vmem:[#allocation5 + $0x1e0] sm:$0xff]
    %v752 = vld [vmem:[#allocation5 + $0x1e8] sm:$0xff]
    %v753 = vld [vmem:[#allocation5 + $0x1f0] sm:$0xff]
    %v754 = vld [vmem:[#allocation5 + $0x1f8] sm:$0xff]
    %v755 = vld [vmem:[%s6] sm:$0x1]
    %v757 = vlaneseq
    %v758 = vshrl.u32 %v757, 7
    %v759 = vsub.s32 0, %v758
    %v760 = vrot.slane %v755, %v759
    %762 = vmatprep.subr.mxu0 0.0
    %763 = vmatpush1.msra.mxu0 %v691
    %764 = vmatprep.subr.mxu0 0.0
    %765 = vmatpush1.msra.mxu0 %v692
    %766 = vmatprep.subr.mxu0 0.0
    %767 = vmatpush1.msra.mxu0 %v693
    %768 = vmatprep.subr.mxu0 0.0
    %769 = vmatpush1.msra.mxu0 %v694
    %770 = vmatprep.subr.mxu0 0.0
    %771 = vmatpush1.msra.mxu0 %v695
    %772 = vmatprep.subr.mxu0 0.0
    %773 = vmatpush1.msra.mxu0 %v696
    %774 = vmatprep.subr.mxu0 0.0
    %775 = vmatpush1.msra.mxu0 %v697
    %776 = vmatprep.subr.mxu0 0.0
    %777 = vmatpush1.msra.mxu0 %v698
    %778 = vmatprep.subr.mxu0 0.0
    %779 = vmatpush1.msra.mxu0 %v699
    %780 = vmatprep.subr.mxu0 0.0
    %781 = vmatpush1.msra.mxu0 %v700
    %782 = vmatprep.subr.mxu0 0.0
    %783 = vmatpush1.msra.mxu0 %v701
    %784 = vmatprep.subr.mxu0 0.0
    %785 = vmatpush1.msra.mxu0 %v702
    %786 = vmatprep.subr.mxu0 0.0
    %787 = vmatpush1.msra.mxu0 %v703
    %788 = vmatprep.subr.mxu0 0.0
    %789 = vmatpush1.msra.mxu0 %v704
    %790 = vmatprep.subr.mxu0 0.0
    %791 = vmatpush1.msra.mxu0 %v705
    %792 = vmatprep.subr.mxu0 0.0
    %793 = vmatpush1.msra.mxu0 %v706
    %794 = vmatprep.subr.mxu0 0.0
    %795 = vmatpush1.msra.mxu0 %v707
    %796 = vmatprep.subr.mxu0 0.0
    %797 = vmatpush1.msra.mxu0 %v708
    %798 = vmatprep.subr.mxu0 0.0
    %799 = vmatpush1.msra.mxu0 %v709
    %800 = vmatprep.subr.mxu0 0.0
    %801 = vmatpush1.msra.mxu0 %v710
    %802 = vmatprep.subr.mxu0 0.0
    %803 = vmatpush1.msra.mxu0 %v711
    %804 = vmatprep.subr.mxu0 0.0
    %805 = vmatpush1.msra.mxu0 %v712
    %806 = vmatprep.subr.mxu0 0.0
    %807 = vmatpush1.msra.mxu0 %v713
    %808 = vmatprep.subr.mxu0 0.0
    %809 = vmatpush1.msra.mxu0 %v714
    %810 = vmatprep.subr.mxu0 0.0
    %811 = vmatpush1.msra.mxu0 %v715
    %812 = vmatprep.subr.mxu0 0.0
    %813 = vmatpush1.msra.mxu0 %v716
    %814 = vmatprep.subr.mxu0 0.0
    %815 = vmatpush1.msra.mxu0 %v717
    %816 = vmatprep.subr.mxu0 0.0
    %817 = vmatpush1.msra.mxu0 %v718
    %818 = vmatprep.subr.mxu0 0.0
    %819 = vmatpush1.msra.mxu0 %v719
    %820 = vmatprep.subr.mxu0 0.0
    %821 = vmatpush1.msra.mxu0 %v720
    %822 = vmatprep.subr.mxu0 0.0
    %823 = vmatpush1.msra.mxu0 %v721
    %824 = vmatprep.subr.mxu0 0.0
    %825 = vmatpush1.msra.mxu0 %v722
    %826 = vmatprep.mubr.f32.mxu0 %v640
    %827 = vmatmul.mubr.f32.gmra.mrb[0].mxu0 %v639
    %v828 = vpop.f32.mrb[0].mxu0
    %v829 = vadd.f32 %v760, %v828
    %v830 = vpop.f32.mrb[0].mxu0
    %831 = vmatprep.mubr.f32.mxu0 %v644
    %832 = vmatmul.mubr.f32.gmra.mrb[0].mxu0 %v643
    %v833 = vpop.f32.mrb[0].mxu0
    %v834 = vadd.f32 %v760, %v833
    %v835 = vpop.f32.mrb[0].mxu0
    %836 = vmatprep.mubr.f32.mxu0 %v648
    %837 = vmatmul.mubr.f32.gmra.mrb[0].mxu0 %v647
    %v838 = vpop.f32.mrb[0].mxu0
    %v839 = vadd.f32 %v760, %v838
    %v840 = vpop.f32.mrb[0].mxu0
    %841 = vmatprep.mubr.f32.mxu0 %v652
    %842 = vmatmul.mubr.f32.gmra.mrb[0].mxu0 %v651
    %v843 = vpop.f32.mrb[0].mxu0
    %v844 = vadd.f32 %v760, %v843
    %v845 = vpop.f32.mrb[0].mxu0
    %846 = vmatprep.mubr.f32.mxu0 %v656
    %847 = vmatmul.mubr.f32.gmra.mrb[0].mxu0 %v655
    %v848 = vpop.f32.mrb[0].mxu0
    %v849 = vadd.f32 %v760, %v848
    %v850 = vpop.f32.mrb[0].mxu0
    %851 = vmatprep.mubr.f32.mxu0 %v660
    %852 = vmatmul.mubr.f32.gmra.mrb[0].mxu0 %v659
    %v853 = vpop.f32.mrb[0].mxu0
    %v854 = vadd.f32 %v760, %v853
    %v855 = vpop.f32.mrb[0].mxu0
    %856 = vmatprep.mubr.f32.mxu0 %v664
    %857 = vmatmul.mubr.f32.gmra.mrb[0].mxu0 %v663
    %v858 = vpop.f32.mrb[0].mxu0
    %v859 = vadd.f32 %v760, %v858
    %v860 = vpop.f32.mrb[0].mxu0
    %861 = vmatprep.mubr.f32.mxu0 %v668
    %862 = vmatmul.mubr.f32.gmra.mrb[0].mxu0 %v667
    %v863 = vpop.f32.mrb[0].mxu0
    %v864 = vadd.f32 %v760, %v863
    %v865 = vpop.f32.mrb[0].mxu0
    %866 = vmatprep.mubr.f32.mxu0 %v672
    %867 = vmatmul.mubr.f32.gmra.mrb[0].mxu0 %v671
    %v868 = vpop.f32.mrb[0].mxu0
    %v869 = vadd.f32 %v760, %v868
    %v870 = vpop.f32.mrb[0].mxu0
    %871 = vmatprep.mubr.f32.mxu0 %v676
    %872 = vmatmul.mubr.f32.gmra.mrb[0].mxu0 %v675
    %v873 = vpop.f32.mrb[0].mxu0
    %v874 = vadd.f32 %v760, %v873
    %v875 = vpop.f32.mrb[0].mxu0
    %876 = vmatprep.mubr.f32.mxu0 %v680
    %877 = vmatmul.mubr.f32.gmra.mrb[0].mxu0 %v679
    %v878 = vpop.f32.mrb[0].mxu0
    %v879 = vadd.f32 %v760, %v878
    %v880 = vpop.f32.mrb[0].mxu0
    %881 = vmatprep.mubr.f32.mxu0 %v684
    %882 = vmatmul.mubr.f32.gmra.mrb[0].mxu0 %v683
    %v883 = vpop.f32.mrb[0].mxu0
    %v884 = vadd.f32 %v760, %v883
    %v885 = vpop.f32.mrb[0].mxu0
    %886 = vmatprep.mubr.f32.mxu0 %v688
    %887 = vmatmul.mubr.f32.gmra.mrb[0].mxu0 %v687
    %v888 = vpop.f32.mrb[0].mxu0
    %v889 = vadd.f32 %v760, %v888
    %v890 = vpop.f32.mrb[0].mxu0
    %891 = vdwg.mxu0
    %892 = vmatprep.subr.mxu0 0.0
    %893 = vmatpush1.msra.mxu0 %v723
    %894 = vmatprep.subr.mxu0 0.0
    %895 = vmatpush1.msra.mxu0 %v724
    %896 = vmatprep.subr.mxu0 0.0
    %897 = vmatpush1.msra.mxu0 %v725
    %898 = vmatprep.subr.mxu0 0.0
    %899 = vmatpush1.msra.mxu0 %v726
    %900 = vmatprep.subr.mxu0 0.0
    %901 = vmatpush1.msra.mxu0 %v727
    %902 = vmatprep.subr.mxu0 0.0
    %903 = vmatpush1.msra.mxu0 %v728
    %904 = vmatprep.subr.mxu0 0.0
    %905 = vmatpush1.msra.mxu0 %v729
    %906 = vmatprep.subr.mxu0 0.0
    %907 = vmatpush1.msra.mxu0 %v730
    %908 = vmatprep.subr.mxu0 0.0
    %909 = vmatpush1.msra.mxu0 %v731
    %910 = vmatprep.subr.mxu0 0.0
    %911 = vmatpush1.msra.mxu0 %v732
    %912 = vmatprep.subr.mxu0 0.0
    %913 = vmatpush1.msra.mxu0 %v733
    %914 = vmatprep.subr.mxu0 0.0
    %915 = vmatpush1.msra.mxu0 %v734
    %916 = vmatprep.subr.mxu0 0.0
    %917 = vmatpush1.msra.mxu0 %v735
    %918 = vmatprep.subr.mxu0 0.0
    %919 = vmatpush1.msra.mxu0 %v736
    %920 = vmatprep.subr.mxu0 0.0
    %921 = vmatpush1.msra.mxu0 %v737
    %922 = vmatprep.subr.mxu0 0.0
    %923 = vmatpush1.msra.mxu0 %v738
    %924 = vmatprep.subr.mxu0 0.0
    %925 = vmatpush1.msra.mxu0 %v739
    %926 = vmatprep.subr.mxu0 0.0
    %927 = vmatpush1.msra.mxu0 %v740
    %928 = vmatprep.subr.mxu0 0.0
    %929 = vmatpush1.msra.mxu0 %v741
    %930 = vmatprep.subr.mxu0 0.0
    %931 = vmatpush1.msra.mxu0 %v742
    %932 = vmatprep.subr.mxu0 0.0
    %933 = vmatpush1.msra.mxu0 %v743
    %934 = vmatprep.subr.mxu0 0.0
    %935 = vmatpush1.msra.mxu0 %v744
    %936 = vmatprep.subr.mxu0 0.0
    %937 = vmatpush1.msra.mxu0 %v745
    %938 = vmatprep.subr.mxu0 0.0
    %939 = vmatpush1.msra.mxu0 %v746
    %940 = vmatprep.subr.mxu0 0.0
    %941 = vmatpush1.msra.mxu0 %v747
    %942 = vmatprep.subr.mxu0 0.0
    %943 = vmatpush1.msra.mxu0 %v748
    %944 = vmatprep.subr.mxu0 0.0
    %945 = vmatpush1.msra.mxu0 %v749
    %946 = vmatprep.subr.mxu0 0.0
    %947 = vmatpush1.msra.mxu0 %v750
    %948 = vmatprep.subr.mxu0 0.0
    %949 = vmatpush1.msra.mxu0 %v751
    %950 = vmatprep.subr.mxu0 0.0
    %951 = vmatpush1.msra.mxu0 %v752
    %952 = vmatprep.subr.mxu0 0.0
    %953 = vmatpush1.msra.mxu0 %v753
    %954 = vmatprep.subr.mxu0 0.0
    %955 = vmatpush1.msra.mxu0 %v754
    %956 = vmatprep.mubr.f32.mxu0 %v642
    %957 = vmatmul.mubr.f32.gmra.mrb[0].mxu0 %v641
    %v958 = vpop.f32.mrb[0].mxu0
    %v959 = vadd.f32 %v829, %v958
    %v960 = vpop.f32.mrb[0].mxu0
    %961 = vmatprep.mubr.f32.mxu0 %v646
    %962 = vmatmul.mubr.f32.gmra.mrb[0].mxu0 %v645
    %v963 = vpop.f32.mrb[0].mxu0
    %v964 = vadd.f32 %v834, %v963
    %v965 = vpop.f32.mrb[0].mxu0
    %966 = vmatprep.mubr.f32.mxu0 %v650
    %967 = vmatmul.mubr.f32.gmra.mrb[0].mxu0 %v649
    %v968 = vpop.f32.mrb[0].mxu0
    %v969 = vadd.f32 %v839, %v968
    %v970 = vpop.f32.mrb[0].mxu0
    %971 = vmatprep.mubr.f32.mxu0 %v654
    %972 = vmatmul.mubr.f32.gmra.mrb[0].mxu0 %v653
    %v973 = vpop.f32.mrb[0].mxu0
    %v974 = vadd.f32 %v844, %v973
    %v975 = vpop.f32.mrb[0].mxu0
    %976 = vmatprep.mubr.f32.mxu0 %v658
    %977 = vmatmul.mubr.f32.gmra.mrb[0].mxu0 %v657
    %v978 = vpop.f32.mrb[0].mxu0
    %v979 = vadd.f32 %v849, %v978
    %v980 = vpop.f32.mrb[0].mxu0
    %981 = vmatprep.mubr.f32.mxu0 %v662
    %982 = vmatmul.mubr.f32.gmra.mrb[0].mxu0 %v661
    %v983 = vpop.f32.mrb[0].mxu0
    %v984 = vadd.f32 %v854, %v983
    %v985 = vpop.f32.mrb[0].mxu0
    %986 = vmatprep.mubr.f32.mxu0 %v666
    %987 = vmatmul.mubr.f32.gmra.mrb[0].mxu0 %v665
    %v988 = vpop.f32.mrb[0].mxu0
    %v989 = vadd.f32 %v859, %v988
    %v990 = vpop.f32.mrb[0].mxu0
    %991 = vmatprep.mubr.f32.mxu0 %v670
    %992 = vmatmul.mubr.f32.gmra.mrb[0].mxu0 %v669
    %v993 = vpop.f32.mrb[0].mxu0
    %v994 = vadd.f32 %v864, %v993
    %v995 = vpop.f32.mrb[0].mxu0
    %996 = vmatprep.mubr.f32.mxu0 %v674
    %997 = vmatmul.mubr.f32.gmra.mrb[0].mxu0 %v673
    %v998 = vpop.f32.mrb[0].mxu0
    %v999 = vadd.f32 %v869, %v998
    %v1000 = vpop.f32.mrb[0].mxu0
    %1001 = vmatprep.mubr.f32.mxu0 %v678
    %1002 = vmatmul.mubr.f32.gmra.mrb[0].mxu0 %v677
    %v1003 = vpop.f32.mrb[0].mxu0
    %v1004 = vadd.f32 %v874, %v1003
    %v1005 = vpop.f32.mrb[0].mxu0
    %1006 = vmatprep.mubr.f32.mxu0 %v682
    %1007 = vmatmul.mubr.f32.gmra.mrb[0].mxu0 %v681
    %v1008 = vpop.f32.mrb[0].mxu0
    %v1009 = vadd.f32 %v879, %v1008
    %v1010 = vpop.f32.mrb[0].mxu0
    %1011 = vmatprep.mubr.f32.mxu0 %v686
    %1012 = vmatmul.mubr.f32.gmra.mrb[0].mxu0 %v685
    %v1013 = vpop.f32.mrb[0].mxu0
    %v1014 = vadd.f32 %v884, %v1013
    %v1015 = vpop.f32.mrb[0].mxu0
    %1016 = vmatprep.mubr.f32.mxu0 %v690
    %1017 = vmatmul.mubr.f32.gmra.mrb[0].mxu0 %v689
    %v1018 = vpop.f32.mrb[0].mxu0
    %v1019 = vadd.f32 %v889, %v1018
    %v1020 = vpop.f32.mrb[0].mxu0
    %1021 = vdwg.mxu0
    %v1022 = vlaneseq
    %v1023 = vshrl.u32 %v1022, 7
    %v1024 = vadd.s32 %v1023, 8
    %v1025 = vadd.s32 %v1023, 16
    %v1026 = vadd.s32 %v1023, 24
    %v1027 = vadd.s32 %v1023, 32
    %v1028 = vadd.s32 %v1023, 40
    %v1029 = vadd.s32 %v1023, 48
    %v1030 = vadd.s32 %v1023, 56
    %v1031 = vadd.s32 %v1023, 64
    %v1032 = vadd.s32 %v1023, 72
    %v1033 = vadd.s32 %v1023, 80
    %v1034 = vadd.s32 %v1023, 88
    %v1035 = vadd.s32 %v1023, 96
    %vm1036 = vcmp.lt.s32.totalorder %v1023, 100
    %vm1037 = vcmp.lt.s32.totalorder %v1024, 100
    %vm1038 = vcmp.lt.s32.totalorder %v1025, 100
    %vm1039 = vcmp.lt.s32.totalorder %v1026, 100
    %vm1040 = vcmp.lt.s32.totalorder %v1027, 100
    %vm1041 = vcmp.lt.s32.totalorder %v1028, 100
    %vm1042 = vcmp.lt.s32.totalorder %v1029, 100
    %vm1043 = vcmp.lt.s32.totalorder %v1030, 100
    %vm1044 = vcmp.lt.s32.totalorder %v1031, 100
    %vm1045 = vcmp.lt.s32.totalorder %v1032, 100
    %vm1046 = vcmp.lt.s32.totalorder %v1033, 100
    %vm1047 = vcmp.lt.s32.totalorder %v1034, 100
    %vm1048 = vcmp.lt.s32.totalorder %v1035, 100
    %v1049 = vsel %vm1036, 1, 0
    %v1050 = vsel %vm1037, 1, 0
    %v1051 = vsel %vm1038, 1, 0
    %v1052 = vsel %vm1039, 1, 0
    %v1053 = vsel %vm1040, 1, 0
    %v1054 = vsel %vm1041, 1, 0
    %v1055 = vsel %vm1042, 1, 0
    %v1056 = vsel %vm1043, 1, 0
    %v1057 = vsel %vm1044, 1, 0
    %v1058 = vsel %vm1045, 1, 0
    %v1059 = vsel %vm1046, 1, 0
    %v1060 = vsel %vm1047, 1, 0
    %v1061 = vsel %vm1048, 1, 0
    %v1062 = vcvt.s32.f32 %v1049
    %v1063 = vcvt.s32.f32 %v1050
    %v1064 = vcvt.s32.f32 %v1051
    %v1065 = vcvt.s32.f32 %v1052
    %v1066 = vcvt.s32.f32 %v1053
    %v1067 = vcvt.s32.f32 %v1054
    %v1068 = vcvt.s32.f32 %v1055
    %v1069 = vcvt.s32.f32 %v1056
    %v1070 = vcvt.s32.f32 %v1057
    %v1071 = vcvt.s32.f32 %v1058
    %v1072 = vcvt.s32.f32 %v1059
    %v1073 = vcvt.s32.f32 %v1060
    %v1074 = vcvt.s32.f32 %v1061
    %v1075 = vmul.f32 %v959, %v1062
    %v1076 = vmul.f32 %v964, %v1063
    %v1077 = vmul.f32 %v969, %v1064
    %v1078 = vmul.f32 %v974, %v1065
    %v1079 = vmul.f32 %v979, %v1066
    %v1080 = vmul.f32 %v984, %v1067
    %v1081 = vmul.f32 %v989, %v1068
    %v1082 = vmul.f32 %v994, %v1069
    %v1083 = vmul.f32 %v999, %v1070
    %v1084 = vmul.f32 %v1004, %v1071
    %v1085 = vmul.f32 %v1009, %v1072
    %v1086 = vmul.f32 %v1014, %v1073
    %v1087 = vmul.f32 %v1019, %v1074
    %v1088 = vadd.f32 %v1075, %v1076
    %v1089 = vadd.f32 %v1088, %v1077
    %v1090 = vadd.f32 %v1089, %v1078
    %v1091 = vadd.f32 %v1090, %v1079
    %v1092 = vadd.f32 %v1091, %v1080
    %v1093 = vadd.f32 %v1092, %v1081
    %v1094 = vadd.f32 %v1093, %v1082
    %v1095 = vadd.f32 %v1094, %v1083
    %v1096 = vadd.f32 %v1095, %v1084
    %v1097 = vadd.f32 %v1096, %v1085
    %v1098 = vadd.f32 %v1097, %v1086
    %v1099 = vadd.f32 %v1098, %v1087
    %v1100 = vrot.slane %v1099, 4
    %v1101 = vadd.f32 %v1099, %v1100
    %v1102 = vrot.slane %v1101, 2
    %v1103 = vadd.f32 %v1101, %v1102
    %v1104 = vrot.slane %v1103, 1
    %v1105 = vadd.f32 %v1103, %v1104
    %v1106 = vmul.f32 %v1105, 0.01
    %1108 = vset.pattern.permute.xlu0 0
    %1109 = vperm.xlu0 %1108, %v959
    %v1110 = vpop.permute.xlu0 %1109
    %1113 = vset.pattern.permute.xlu0 0
    %1114 = vperm.xlu0 %1113, %v964
    %v1115 = vpop.permute.xlu0 %1114
    %1118 = vset.pattern.permute.xlu0 0
    %1119 = vperm.xlu0 %1118, %v969
    %v1120 = vpop.permute.xlu0 %1119
    %1123 = vset.pattern.permute.xlu0 0
    %1124 = vperm.xlu0 %1123, %v974
    %v1125 = vpop.permute.xlu0 %1124
    %1128 = vset.pattern.permute.xlu0 0
    %1129 = vperm.xlu0 %1128, %v979
    %v1130 = vpop.permute.xlu0 %1129
    %1133 = vset.pattern.permute.xlu0 0
    %1134 = vperm.xlu0 %1133, %v984
    %v1135 = vpop.permute.xlu0 %1134
    %1138 = vset.pattern.permute.xlu0 0
    %1139 = vperm.xlu0 %1138, %v989
    %v1140 = vpop.permute.xlu0 %1139
    %1143 = vset.pattern.permute.xlu0 0
    %1144 = vperm.xlu0 %1143, %v994
    %v1145 = vpop.permute.xlu0 %1144
    %1148 = vset.pattern.permute.xlu0 0
    %1149 = vperm.xlu0 %1148, %v999
    %v1150 = vpop.permute.xlu0 %1149
    %1153 = vset.pattern.permute.xlu0 0
    %1154 = vperm.xlu0 %1153, %v1004
    %v1155 = vpop.permute.xlu0 %1154
    %1158 = vset.pattern.permute.xlu0 0
    %1159 = vperm.xlu0 %1158, %v1009
    %v1160 = vpop.permute.xlu0 %1159
    %1163 = vset.pattern.permute.xlu0 0
    %1164 = vperm.xlu0 %1163, %v1014
    %v1165 = vpop.permute.xlu0 %1164
    %1168 = vset.pattern.permute.xlu0 0
    %1169 = vperm.xlu0 %1168, %v1019
    %v1170 = vpop.permute.xlu0 %1169
    %v1172 = vadd.f32 %v1110, %v959
    %v1173 = vadd.f32 %v1115, %v964
    %v1174 = vadd.f32 %v1120, %v969
    %v1175 = vadd.f32 %v1125, %v974
    %v1176 = vadd.f32 %v1130, %v979
    %v1177 = vadd.f32 %v1135, %v984
    %v1178 = vadd.f32 %v1140, %v989
    %v1179 = vadd.f32 %v1145, %v994
    %v1180 = vadd.f32 %v1150, %v999
    %v1181 = vadd.f32 %v1155, %v1004
    %v1182 = vadd.f32 %v1160, %v1009
    %v1183 = vadd.f32 %v1165, %v1014
    %v1184 = vadd.f32 %v1170, %v1019
    %v1185 = vsub.f32 %v1172, %v1106
    %v1186 = vsub.f32 %v1173, %v1106
    %v1187 = vsub.f32 %v1174, %v1106
    %v1188 = vsub.f32 %v1175, %v1106
    %v1189 = vsub.f32 %v1176, %v1106
    %v1190 = vsub.f32 %v1177, %v1106
    %v1191 = vsub.f32 %v1178, %v1106
    %v1192 = vsub.f32 %v1179, %v1106
    %v1193 = vsub.f32 %v1180, %v1106
    %v1194 = vsub.f32 %v1181, %v1106
    %v1195 = vsub.f32 %v1182, %v1106
    %v1196 = vsub.f32 %v1183, %v1106
    %v1197 = vsub.f32 %v1184, %v1106
    %1198 = vst [vmem:[#allocation7] sm:$0xff] %v1185
    %1199 = vst [vmem:[#allocation7 + $0x8] sm:$0xff] %v1186
    %1200 = vst [vmem:[#allocation7 + $0x10] sm:$0xff] %v1187
    %1201 = vst [vmem:[#allocation7 + $0x18] sm:$0xff] %v1188
    %1202 = vst [vmem:[#allocation7 + $0x20] sm:$0xff] %v1189
    %1203 = vst [vmem:[#allocation7 + $0x28] sm:$0xff] %v1190
    %1204 = vst [vmem:[#allocation7 + $0x30] sm:$0xff] %v1191
    %1205 = vst [vmem:[#allocation7 + $0x38] sm:$0xff] %v1192
    %1206 = vst [vmem:[#allocation7 + $0x40] sm:$0xff] %v1193
    %1207 = vst [vmem:[#allocation7 + $0x48] sm:$0xff] %v1194
    %1208 = vst [vmem:[#allocation7 + $0x50] sm:$0xff] %v1195
    %1209 = vst [vmem:[#allocation7 + $0x58] sm:$0xff] %v1196
    %1210 = vst [vmem:[#allocation7 + $0x60] sm:$0xff] %v1197
    // Predicated region
    $region38: #{tpu_custom_call.1} parent=1 // pred_check
      _
    $region39: #{tpu_custom_call.1} parent=1 // pred_check_branch
      %1212 = sbr.rel (0) target = $region41
    $region40: #{tpu_custom_call.1} parent=1 // pred_region
      %s1214 = ssub.s32 1664, 1664
      %1215 = vsyncadd [#allocation4], %s1214
      %s1216 = sshll.u32 [#allocation7], 4
      %s1217 = int_to_ptr.vmem [resolvable:$true] %s1216
      %1222 = dma.vmem_to_hbm [thread:$0]  %s1217, 1664, %s7, [#allocation4], 128, 128, 8
    $region41: #{tpu_custom_call.1} parent=1 // pred_fallthru
      _
    // Predicated region
    $region42: #{tpu_custom_call.1} parent=1 // pred_check
      _
    $region43: #{tpu_custom_call.1} parent=1 // pred_check_branch
      %1224 = sbr.rel (0) target = $region45
    $region44: #{tpu_custom_call.1} parent=1 // pred_region
      %1225 = dma.done [#allocation4], 1664
    $region45: #{tpu_custom_call.1} parent=1 // pred_fallthru
      _
    %1226 = vsyncpa [#allocation3], 1
    %1227 = vsyncpa [#allocation6], 1
    %1228 = vsyncpa [#allocation4], 1

</llo_original>
